<compile_context>
chip_gen: v7x
topology: tpu7x:2x2x1
jax: 0.10.0
libtpu: 0.0.40
codegen_flags: <defaults>
</compile_context>

<pallas_src>
import jax
import jax.numpy as jnp
from jax.experimental import pallas as pl
from jax.experimental.pallas import tpu as pltpu

OUT_DIM = 28 * 28          # 784 (== full output array last dim -> legal block)
TB_MAX = 1024              # batch tile (multiple of 8)


def _round_up(n: int, m: int) -> int:
    return ((n + m - 1) // m) * m


def _decoder_kernel(x_ref, w1_ref, b1_ref, w2_ref, b2_ref, w3_ref, b3_ref, o_ref):
    # Matmul-input dtype follows the weights (f32 or bf16); accumulation is
    # always f32 via preferred_element_type; biases/activations stay f32.
    cd = w1_ref.dtype
    # Layer 1: (TB, L) @ (L, 64) + b1, ReLU
    h1 = jnp.dot(x_ref[...], w1_ref[...], preferred_element_type=jnp.float32)
    h1 = jnp.maximum(h1 + b1_ref[...], 0.0)
    # Layer 2: (TB, 64) @ (64, 128) + b2, ReLU
    h2 = jnp.dot(h1.astype(cd), w2_ref[...], preferred_element_type=jnp.float32)
    h2 = jnp.maximum(h2 + b2_ref[...], 0.0)
    # Layer 3: (TB, 128) @ (128, 784) + b3, Tanh   (K=128 underfills v6e/v7x
    # MXU contraction depth; padding K buys nothing, write path dominates.)
    h3 = jnp.dot(h2.astype(cd), w3_ref[...], preferred_element_type=jnp.float32)
    o_ref[...] = jnp.tanh(h3 + b3_ref[...]).astype(o_ref.dtype)


def decoder_forward(x, params, *, compute_dtype=jnp.float32, out_dtype=jnp.float32):
    """x: (B, latent_dim). Returns (B, 1, 28, 28) in out_dtype."""
    w1, b1, w2, b2, w3, b3 = params
    B, latent_dim = x.shape

    # Optional reduced-precision matmul inputs (f32 accumulation kept).
    if compute_dtype != jnp.float32:
        x = x.astype(compute_dtype)
        w1 = w1.astype(compute_dtype)
        w2 = w2.astype(compute_dtype)
        w3 = w3.astype(compute_dtype)

    # Batch tiling: multiple of 8 (f32 sublane), capped at TB_MAX, and split
    # so that B > 8 yields >= 2 grid steps (keeps both v7x TensorCores busy).
    tb = max(8, min(TB_MAX, _round_up(pl.cdiv(B, 2), 8)))
    b_pad = _round_up(B, tb)
    x_pad = jnp.pad(x, ((0, b_pad - B), (0, 0))) if b_pad != B else x
    grid = (b_pad // tb,)

    out_flat = pl.pallas_call(
        _decoder_kernel,
        out_shape=jax.ShapeDtypeStruct((b_pad, OUT_DIM), out_dtype),
        grid=grid,
        in_specs=[
            # Input tile walks the batch.
            pl.BlockSpec((tb, latent_dim), lambda i: (i, 0)),
            # Weights / biases: constant index_map -> stay VMEM-resident.
            pl.BlockSpec(w1.shape, lambda i: (0, 0)),
            pl.BlockSpec(b1.shape, lambda i: (0, 0)),
            pl.BlockSpec(w2.shape, lambda i: (0, 0)),
            pl.BlockSpec(b2.shape, lambda i: (0, 0)),
            pl.BlockSpec(w3.shape, lambda i: (0, 0)),
            pl.BlockSpec(b3.shape, lambda i: (0, 0)),
        ],
        out_specs=pl.BlockSpec((tb, OUT_DIM), lambda i: (i, 0)),
        compiler_params=pltpu.CompilerParams(
            dimension_semantics=("parallel",),
        ),
    )(x_pad, w1, b1, w2, b2, w3, b3)

    # Drop batch padding only if any, then NCHW reshape (free bitcast when
    # b_pad == B; otherwise a small slice over the padded rows).
    if b_pad != B:
        out_flat = out_flat[:B]
    return out_flat.reshape(B, 1, 28, 28)


def init_decoder_params(key, latent_dim):
    """Deterministic init mimicking nn.Linear (U(-1/sqrt(fan_in), +1/sqrt(fan_in))).

    Weights stored transposed to (in, out) so the kernel computes y = x @ W + b
    (PyTorch Linear: y = x @ W.T + b with W of shape (out, in)).
    Biases kept 2-D (1, out) for clean VMEM layout / broadcasting.
    """
    dims = [(latent_dim, 64), (64, 128), (128, OUT_DIM)]
    params = []
    for (fan_in, fan_out) in dims:
        key, kw, kb = jax.random.split(key, 3)
        bound = 1.0 / jnp.sqrt(float(fan_in))
        w = jax.random.uniform(kw, (fan_in, fan_out), jnp.float32, -bound, bound)
        b = jax.random.uniform(kb, (1, fan_out), jnp.float32, -bound, bound)
        params += [w, b]
    return tuple(params)


def _reference_forward(x, params):
    """Pure-JAX reference for correctness check."""
    w1, b1, w2, b2, w3, b3 = params
    h = jnp.maximum(x @ w1 + b1, 0.0)
    h = jnp.maximum(h @ w2 + b2, 0.0)
    h = jnp.tanh(h @ w3 + b3)
    return h.reshape(-1, 1, 28, 28)


if __name__ == "__main__":
    latent_dim = 32

    key = jax.random.PRNGKey(0)
    params = init_decoder_params(key, latent_dim)

    # Small batch (as in the spec example) -- exact f32 parity.
    key, kx = jax.random.split(key)
    x_small = jax.random.normal(kx, (2, latent_dim), dtype=jnp.float32)
    out_small = jax.block_until_ready(decoder_forward(x_small, params))
    ref_small = _reference_forward(x_small, params)
    assert out_small.shape == (2, 1, 28, 28), out_small.shape
    assert jnp.allclose(out_small, ref_small, atol=1e-5, rtol=1e-5), "mismatch (small batch)"

    # Larger, non-multiple batch to exercise the 2-step grid + padding path.
    key, kx2 = jax.random.split(key)
    x_big = jax.random.normal(kx2, (300, latent_dim), dtype=jnp.float32)
    out_big = jax.block_until_ready(decoder_forward(x_big, params))
    ref_big = _reference_forward(x_big, params)
    assert out_big.shape == (300, 1, 28, 28), out_big.shape
    assert jnp.allclose(out_big, ref_big, atol=1e-5, rtol=1e-5), "mismatch (tiled batch)"

    # Reduced-precision path (bf16 matmul inputs + bf16 output, f32 accumulate)
    # -- relaxed tolerance, recommended for v5e / write-bound v6e-v7x.
    out_bf16 = jax.block_until_ready(
        decoder_forward(x_big, params,
                        compute_dtype=jnp.bfloat16, out_dtype=jnp.bfloat16))
    assert out_bf16.shape == (300, 1, 28, 28), out_bf16.shape
    assert jnp.allclose(out_bf16.astype(jnp.float32), ref_big, atol=5e-2), "mismatch (bf16 path)"

    print("KERNEL_OK")
</pallas_src>

<mosaic_0001>
module attributes {stable_mosaic.version = 11 : i64} {
  func.func @_decoder_kernel(%arg0: i32, %arg1: memref<8x32xf32, #tpu.memory_space<vmem>>, %arg2: memref<32x64xf32, #tpu.memory_space<vmem>>, %arg3: memref<1x64xf32, #tpu.memory_space<vmem>>, %arg4: memref<64x128xf32, #tpu.memory_space<vmem>>, %arg5: memref<1x128xf32, #tpu.memory_space<vmem>>, %arg6: memref<128x784xf32, #tpu.memory_space<vmem>>, %arg7: memref<1x784xf32, #tpu.memory_space<vmem>>, %arg8: memref<8x784xf32, #tpu.memory_space<vmem>>) attributes {dimension_semantics = [#tpu.dimension_semantics<parallel>], iteration_bounds = array<i64: 1>, scalar_prefetch = 0 : i64, scratch_operands = 0 : i64, tpu.core_type = #tpu.core_type<tc>, window_params = [{transform_indices = @transform_0, window_bounds = array<i64: 8, 32>}, {pipeline_mode = #tpu.pipeline_mode<synchronous>, transform_indices = @transform_1, window_bounds = array<i64: 32, 64>}, {pipeline_mode = #tpu.pipeline_mode<synchronous>, transform_indices = @transform_2, window_bounds = array<i64: 1, 64>}, {pipeline_mode = #tpu.pipeline_mode<synchronous>, transform_indices = @transform_3, window_bounds = array<i64: 64, 128>}, {pipeline_mode = #tpu.pipeline_mode<synchronous>, transform_indices = @transform_4, window_bounds = array<i64: 1, 128>}, {pipeline_mode = #tpu.pipeline_mode<synchronous>, transform_indices = @transform_5, window_bounds = array<i64: 128, 784>}, {pipeline_mode = #tpu.pipeline_mode<synchronous>, transform_indices = @transform_6, window_bounds = array<i64: 1, 784>}, {transform_indices = @transform_7, window_bounds = array<i64: 8, 784>}]} {
    %c0 = arith.constant 0 : index
    %c0_0 = arith.constant 0 : index
    %0 = vector.load %arg1[%c0, %c0_0] : memref<8x32xf32, #tpu.memory_space<vmem>>, vector<8x32xf32>
    %c0_1 = arith.constant 0 : index
    %c0_2 = arith.constant 0 : index
    %1 = vector.load %arg2[%c0_1, %c0_2] : memref<32x64xf32, #tpu.memory_space<vmem>>, vector<32x64xf32>
    %cst = arith.constant dense<0.000000e+00> : vector<8x64xf32>
    %2 = tpu.matmul %0, %1, %cst {dimension_numbers = #tpu.dot_dimension_numbers<[1], [0], [0], [1], [0, 0, 1, 1], [], []>} : vector<8x32xf32>, vector<32x64xf32>, vector<8x64xf32> -> vector<8x64xf32>
    %c0_3 = arith.constant 0 : index
    %c0_4 = arith.constant 0 : index
    %3 = vector.load %arg3[%c0_3, %c0_4] : memref<1x64xf32, #tpu.memory_space<vmem>>, vector<1x64xf32>
    %4 = vector.broadcast %3 : vector<1x64xf32> to vector<8x64xf32>
    %5 = arith.addf %2, %4 : vector<8x64xf32>
    %cst_5 = arith.constant 0.000000e+00 : f32
    %6 = vector.broadcast %cst_5 : f32 to vector<8x64xf32>
    %7 = arith.maximumf %5, %6 : vector<8x64xf32>
    %c0_6 = arith.constant 0 : index
    %c0_7 = arith.constant 0 : index
    %8 = vector.load %arg4[%c0_6, %c0_7] : memref<64x128xf32, #tpu.memory_space<vmem>>, vector<64x128xf32>
    %cst_8 = arith.constant dense<0.000000e+00> : vector<8x128xf32>
    %9 = tpu.matmul %7, %8, %cst_8 {dimension_numbers = #tpu.dot_dimension_numbers<[1], [0], [0], [1], [0, 0, 1, 1], [], []>} : vector<8x64xf32>, vector<64x128xf32>, vector<8x128xf32> -> vector<8x128xf32>
    %c0_9 = arith.constant 0 : index
    %c0_10 = arith.constant 0 : index
    %10 = vector.load %arg5[%c0_9, %c0_10] : memref<1x128xf32, #tpu.memory_space<vmem>>, vector<1x128xf32>
    %11 = vector.broadcast %10 : vector<1x128xf32> to vector<8x128xf32>
    %12 = arith.addf %9, %11 : vector<8x128xf32>
    %cst_11 = arith.constant 0.000000e+00 : f32
    %13 = vector.broadcast %cst_11 : f32 to vector<8x128xf32>
    %14 = arith.maximumf %12, %13 : vector<8x128xf32>
    %c0_12 = arith.constant 0 : index
    %c0_13 = arith.constant 0 : index
    %15 = vector.load %arg6[%c0_12, %c0_13] : memref<128x784xf32, #tpu.memory_space<vmem>>, vector<128x784xf32>
    %cst_14 = arith.constant dense<0.000000e+00> : vector<8x784xf32>
    %16 = tpu.matmul %14, %15, %cst_14 {dimension_numbers = #tpu.dot_dimension_numbers<[1], [0], [0], [1], [0, 0, 1, 1], [], []>} : vector<8x128xf32>, vector<128x784xf32>, vector<8x784xf32> -> vector<8x784xf32>
    %c0_15 = arith.constant 0 : index
    %c0_16 = arith.constant 0 : index
    %17 = vector.load %arg7[%c0_15, %c0_16] : memref<1x784xf32, #tpu.memory_space<vmem>>, vector<1x784xf32>
    %18 = vector.broadcast %17 : vector<1x784xf32> to vector<8x784xf32>
    %19 = arith.addf %16, %18 : vector<8x784xf32>
    %20 = math.tanh %19 : vector<8x784xf32>
    %c0_17 = arith.constant 0 : index
    %c0_18 = arith.constant 0 : index
    %21 = vector.load %arg8[%c0_17, %c0_18] : memref<8x784xf32, #tpu.memory_space<vmem>>, vector<8x784xf32>
    tpu.vector_store %arg8[%c0_17, %c0_18], %20 {strides = array<i32>} : memref<8x784xf32, #tpu.memory_space<vmem>>, vector<8x784xf32>,
    return
  }
  func.func @transform_0(%arg0: i32) -> (i32, i32) {
    %c0_i32 = arith.constant 0 : i32
    %c0_i32_0 = arith.constant 0 : i32
    return %arg0, %c0_i32 : i32, i32
  }
  func.func @transform_1(%arg0: i32) -> (i32, i32) {
    %c0_i32 = arith.constant 0 : i32
    %c0_i32_0 = arith.constant 0 : i32
    %c0_i32_1 = arith.constant 0 : i32
    return %c0_i32, %c0_i32_0 : i32, i32
  }
  func.func @transform_2(%arg0: i32) -> (i32, i32) {
    %c0_i32 = arith.constant 0 : i32
    %c0_i32_0 = arith.constant 0 : i32
    %c0_i32_1 = arith.constant 0 : i32
    return %c0_i32, %c0_i32_0 : i32, i32
  }
  func.func @transform_3(%arg0: i32) -> (i32, i32) {
    %c0_i32 = arith.constant 0 : i32
    %c0_i32_0 = arith.constant 0 : i32
    %c0_i32_1 = arith.constant 0 : i32
    return %c0_i32, %c0_i32_0 : i32, i32
  }
  func.func @transform_4(%arg0: i32) -> (i32, i32) {
    %c0_i32 = arith.constant 0 : i32
    %c0_i32_0 = arith.constant 0 : i32
    %c0_i32_1 = arith.constant 0 : i32
    return %c0_i32, %c0_i32_0 : i32, i32
  }
  func.func @transform_5(%arg0: i32) -> (i32, i32) {
    %c0_i32 = arith.constant 0 : i32
    %c0_i32_0 = arith.constant 0 : i32
    %c0_i32_1 = arith.constant 0 : i32
    return %c0_i32, %c0_i32_0 : i32, i32
  }
  func.func @transform_6(%arg0: i32) -> (i32, i32) {
    %c0_i32 = arith.constant 0 : i32
    %c0_i32_0 = arith.constant 0 : i32
    %c0_i32_1 = arith.constant 0 : i32
    return %c0_i32, %c0_i32_0 : i32, i32
  }
  func.func @transform_7(%arg0: i32) -> (i32, i32) {
    %c0_i32 = arith.constant 0 : i32
    %c0_i32_0 = arith.constant 0 : i32
    return %arg0, %c0_i32 : i32, i32
  }
}

</mosaic_0001>

<llo_original>
// kernel: tpu_custom_call.1
$region0: #{tpu_custom_call.1}
  #allocation0 [shape = 'u32[]', space=smem, size = 0x4, offset = 0x4, fixed_abs, tag = 'smem constant byte address 0x4 - core index']
  #allocation1 [shape = 'u32[144,128]{1,0:T(1,128)}', space=vmem, size = 0x12000, scoped, tag = 'internal scratch']
  %s0 = inlined_call_operand.vmem [shape: f32[8,32], index: 0, kind: input, shape index: {}]
  %s1 = inlined_call_operand.vmem [shape: f32[32,64], index: 1, kind: input, shape index: {}]
  %s2 = inlined_call_operand.vmem [shape: f32[1,64], index: 2, kind: input, shape index: {}]
  %s3 = inlined_call_operand.vmem [shape: f32[64,128], index: 3, kind: input, shape index: {}]
  %s4 = inlined_call_operand.vmem [shape: f32[1,128], index: 4, kind: input, shape index: {}]
  %s5 = inlined_call_operand.vmem [shape: f32[128,784], index: 5, kind: input, shape index: {}]
  %s6 = inlined_call_operand.vmem [shape: f32[1,784], index: 6, kind: input, shape index: {}]
  %s7 = inlined_call_operand.hbm [shape: f32[8,784], index: 7, kind: output, shape index: {}]
  %s8 = sld [smem:[#allocation0]]
  $region38: #{tpu_custom_call.1} parent=0
    _
  %s10 = ssub.s32 1, %s8
  %s11 = scalar_select 0, %s10, %s8
  $region1: #{tpu_custom_call.1} parent=0
    #allocation2 [shape = 'u8[28672]{0}', space=vmem, size = 0x7000, scoped, tag = 'output window, operand 0, single buffered']
    #allocation3 [shape = 's32[1]{0}', space=sflag, size = 0x4, scoped, tag = 'scoped memory for tpu_custom_call.1']
    %12 = vsyncpa [#allocation3], 0
    // Predicated region
    $region2: #{tpu_custom_call.1} parent=1 // pred_check
      _
    $region3: #{tpu_custom_call.1} parent=1 // pred_check_branch
      %14 = sbr.rel (0) target = $region5
    $region4: #{tpu_custom_call.1} parent=1 // pred_region
      _
    $region5: #{tpu_custom_call.1} parent=1 // pred_fallthru
      _
    // Predicated region
    $region6: #{tpu_custom_call.1} parent=1 // pred_check
      _
    $region7: #{tpu_custom_call.1} parent=1 // pred_check_branch
      %16 = sbr.rel (0) target = $region9
    $region8: #{tpu_custom_call.1} parent=1 // pred_region
      _
    $region9: #{tpu_custom_call.1} parent=1 // pred_fallthru
      _
    // Predicated region
    $region10: #{tpu_custom_call.1} parent=1 // pred_check
      _
    $region11: #{tpu_custom_call.1} parent=1 // pred_check_branch
      %18 = sbr.rel (0) target = $region13
    $region12: #{tpu_custom_call.1} parent=1 // pred_region
      _
    $region13: #{tpu_custom_call.1} parent=1 // pred_fallthru
      _
    // Predicated region
    $region14: #{tpu_custom_call.1} parent=1 // pred_check
      _
    $region15: #{tpu_custom_call.1} parent=1 // pred_check_branch
      %20 = sbr.rel (0) target = $region17
    $region16: #{tpu_custom_call.1} parent=1 // pred_region
      _
    $region17: #{tpu_custom_call.1} parent=1 // pred_fallthru
      _
    // Predicated region
    $region18: #{tpu_custom_call.1} parent=1 // pred_check
      _
    $region19: #{tpu_custom_call.1} parent=1 // pred_check_branch
      %22 = sbr.rel (0) target = $region21
    $region20: #{tpu_custom_call.1} parent=1 // pred_region
      _
    $region21: #{tpu_custom_call.1} parent=1 // pred_fallthru
      _
    // Predicated region
    $region22: #{tpu_custom_call.1} parent=1 // pred_check
      _
    $region23: #{tpu_custom_call.1} parent=1 // pred_check_branch
      %24 = sbr.rel (0) target = $region25
    $region24: #{tpu_custom_call.1} parent=1 // pred_region
      _
    $region25: #{tpu_custom_call.1} parent=1 // pred_fallthru
      _
    // Predicated region
    $region26: #{tpu_custom_call.1} parent=1 // pred_check
      _
    $region27: #{tpu_custom_call.1} parent=1 // pred_check_branch
      %26 = sbr.rel (0) target = $region29
    $region28: #{tpu_custom_call.1} parent=1 // pred_region
      _
    $region29: #{tpu_custom_call.1} parent=1 // pred_fallthru
      _
    %v27 = vld [vmem:[%s0] sm:$0xff]
    %v28 = vld [vmem:[%s1] sm:$0xff]
    %v29 = vld [vmem:[%s1 + $0x8] sm:$0xff]
    %v30 = vld [vmem:[%s1 + $0x10] sm:$0xff]
    %v31 = vld [vmem:[%s1 + $0x18] sm:$0xff]
    %v32 = vld [vmem:[%s2] sm:$0x1]
    %v34 = vlaneseq
    %v35 = vshrl.u32 %v34, 7
    %v36 = vsub.s32 0, %v35
    %v37 = vrot.slane %v32, %v36
    %vm39 = vcmask 261120
    %v41 = vsel %vm39, %v27, 0
    %43 = vmatprep.subr.mxu0 0.0
    %44 = vmatpush1.msra.mxu0 %v28
    %45 = vmatprep.subr.mxu0 0.0
    %46 = vmatpush1.msra.mxu0 %v29
    %47 = vmatprep.subr.mxu0 0.0
    %48 = vmatpush1.msra.mxu0 %v30
    %49 = vmatprep.subr.mxu0 0.0
    %50 = vmatpush1.msra.mxu0 %v31
    %51 = vmatprep.subr.mxu0 0.0
    %52 = vmatpush1.msra.mxu0 0.0
    %53 = vmatprep.subr.mxu0 0.0
    %54 = vmatpush1.msra.mxu0 0.0
    %55 = vmatprep.subr.mxu0 0.0
    %56 = vmatpush1.msra.mxu0 0.0
    %57 = vmatprep.subr.mxu0 0.0
    %58 = vmatpush1.msra.mxu0 0.0
    %59 = vmatprep.subr.mxu0 0.0
    %60 = vmatpush1.msra.mxu0 0.0
    %61 = vmatprep.subr.mxu0 0.0
    %62 = vmatpush1.msra.mxu0 0.0
    %63 = vmatprep.subr.mxu0 0.0
    %64 = vmatpush1.msra.mxu0 0.0
    %65 = vmatprep.subr.mxu0 0.0
    %66 = vmatpush1.msra.mxu0 0.0
    %67 = vmatprep.subr.mxu0 0.0
    %68 = vmatpush1.msra.mxu0 0.0
    %69 = vmatprep.subr.mxu0 0.0
    %70 = vmatpush1.msra.mxu0 0.0
    %71 = vmatprep.subr.mxu0 0.0
    %72 = vmatpush1.msra.mxu0 0.0
    %73 = vmatprep.subr.mxu0 0.0
    %74 = vmatpush1.msra.mxu0 0.0
    %75 = vmatprep.subr.mxu0 0.0
    %76 = vmatpush1.msra.mxu0 0.0
    %77 = vmatprep.subr.mxu0 0.0
    %78 = vmatpush1.msra.mxu0 0.0
    %79 = vmatprep.subr.mxu0 0.0
    %80 = vmatpush1.msra.mxu0 0.0
    %81 = vmatprep.subr.mxu0 0.0
    %82 = vmatpush1.msra.mxu0 0.0
    %83 = vmatprep.subr.mxu0 0.0
    %84 = vmatpush1.msra.mxu0 0.0
    %85 = vmatprep.subr.mxu0 0.0
    %86 = vmatpush1.msra.mxu0 0.0
    %87 = vmatprep.subr.mxu0 0.0
    %88 = vmatpush1.msra.mxu0 0.0
    %89 = vmatprep.subr.mxu0 0.0
    %90 = vmatpush1.msra.mxu0 0.0
    %91 = vmatprep.subr.mxu0 0.0
    %92 = vmatpush1.msra.mxu0 0.0
    %93 = vmatprep.subr.mxu0 0.0
    %94 = vmatpush1.msra.mxu0 0.0
    %95 = vmatprep.subr.mxu0 0.0
    %96 = vmatpush1.msra.mxu0 0.0
    %97 = vmatprep.subr.mxu0 0.0
    %98 = vmatpush1.msra.mxu0 0.0
    %99 = vmatprep.subr.mxu0 0.0
    %100 = vmatpush1.msra.mxu0 0.0
    %101 = vmatprep.subr.mxu0 0.0
    %102 = vmatpush1.msra.mxu0 0.0
    %103 = vmatprep.subr.mxu0 0.0
    %104 = vmatpush1.msra.mxu0 0.0
    %105 = vmatprep.subr.mxu0 0.0
    %106 = vmatpush1.msra.mxu0 0.0
    %107 = vmatprep.mubr.f32.mxu0 0.0
    %108 = vmatmul.mubr.f32.gmra.mrb[0].mxu0 %v41
    %v109 = vpop.f32.mrb[0].mxu0
    %v110 = vadd.f32 %v37, %v109
    %v111 = vpop.f32.mrb[0].mxu0
    %112 = vdwg.mxu0
    %v113 = vmax.f32 %v110, 0.0
    %v114 = vld [vmem:[%s3] sm:$0xff]
    %v115 = vld [vmem:[%s3 + $0x8] sm:$0xff]
    %v116 = vld [vmem:[%s3 + $0x10] sm:$0xff]
    %v117 = vld [vmem:[%s3 + $0x18] sm:$0xff]
    %v118 = vld [vmem:[%s3 + $0x20] sm:$0xff]
    %v119 = vld [vmem:[%s3 + $0x28] sm:$0xff]
    %v120 = vld [vmem:[%s3 + $0x30] sm:$0xff]
    %v121 = vld [vmem:[%s3 + $0x38] sm:$0xff]
    %v122 = vld [vmem:[%s4] sm:$0x1]
    %v124 = vlaneseq
    %v125 = vshrl.u32 %v124, 7
    %v126 = vsub.s32 0, %v125
    %v127 = vrot.slane %v122, %v126
    %vm129 = vcmask 523264
    %v131 = vsel %vm129, %v113, 0
    %133 = vmatprep.subr.mxu0 0.0
    %134 = vmatpush1.msra.mxu0 %v114
    %135 = vmatprep.subr.mxu0 0.0
    %136 = vmatpush1.msra.mxu0 %v115
    %137 = vmatprep.subr.mxu0 0.0
    %138 = vmatpush1.msra.mxu0 %v116
    %139 = vmatprep.subr.mxu0 0.0
    %140 = vmatpush1.msra.mxu0 %v117
    %141 = vmatprep.subr.mxu0 0.0
    %142 = vmatpush1.msra.mxu0 %v118
    %143 = vmatprep.subr.mxu0 0.0
    %144 = vmatpush1.msra.mxu0 %v119
    %145 = vmatprep.subr.mxu0 0.0
    %146 = vmatpush1.msra.mxu0 %v120
    %147 = vmatprep.subr.mxu0 0.0
    %148 = vmatpush1.msra.mxu0 %v121
    %149 = vmatprep.subr.mxu0 0.0
    %150 = vmatpush1.msra.mxu0 0.0
    %151 = vmatprep.subr.mxu0 0.0
    %152 = vmatpush1.msra.mxu0 0.0
    %153 = vmatprep.subr.mxu0 0.0
    %154 = vmatpush1.msra.mxu0 0.0
    %155 = vmatprep.subr.mxu0 0.0
    %156 = vmatpush1.msra.mxu0 0.0
    %157 = vmatprep.subr.mxu0 0.0
    %158 = vmatpush1.msra.mxu0 0.0
    %159 = vmatprep.subr.mxu0 0.0
    %160 = vmatpush1.msra.mxu0 0.0
    %161 = vmatprep.subr.mxu0 0.0
    %162 = vmatpush1.msra.mxu0 0.0
    %163 = vmatprep.subr.mxu0 0.0
    %164 = vmatpush1.msra.mxu0 0.0
    %165 = vmatprep.subr.mxu0 0.0
    %166 = vmatpush1.msra.mxu0 0.0
    %167 = vmatprep.subr.mxu0 0.0
    %168 = vmatpush1.msra.mxu0 0.0
    %169 = vmatprep.subr.mxu0 0.0
    %170 = vmatpush1.msra.mxu0 0.0
    %171 = vmatprep.subr.mxu0 0.0
    %172 = vmatpush1.msra.mxu0 0.0
    %173 = vmatprep.subr.mxu0 0.0
    %174 = vmatpush1.msra.mxu0 0.0
    %175 = vmatprep.subr.mxu0 0.0
    %176 = vmatpush1.msra.mxu0 0.0
    %177 = vmatprep.subr.mxu0 0.0
    %178 = vmatpush1.msra.mxu0 0.0
    %179 = vmatprep.subr.mxu0 0.0
    %180 = vmatpush1.msra.mxu0 0.0
    %181 = vmatprep.subr.mxu0 0.0
    %182 = vmatpush1.msra.mxu0 0.0
    %183 = vmatprep.subr.mxu0 0.0
    %184 = vmatpush1.msra.mxu0 0.0
    %185 = vmatprep.subr.mxu0 0.0
    %186 = vmatpush1.msra.mxu0 0.0
    %187 = vmatprep.subr.mxu0 0.0
    %188 = vmatpush1.msra.mxu0 0.0
    %189 = vmatprep.subr.mxu0 0.0
    %190 = vmatpush1.msra.mxu0 0.0
    %191 = vmatprep.subr.mxu0 0.0
    %192 = vmatpush1.msra.mxu0 0.0
    %193 = vmatprep.subr.mxu0 0.0
    %194 = vmatpush1.msra.mxu0 0.0
    %195 = vmatprep.subr.mxu0 0.0
    %196 = vmatpush1.msra.mxu0 0.0
    %197 = vmatprep.mubr.f32.mxu0 0.0
    %198 = vmatmul.mubr.f32.gmra.mrb[0].mxu0 %v131
    %v199 = vpop.f32.mrb[0].mxu0
    %v200 = vadd.f32 %v127, %v199
    %v201 = vpop.f32.mrb[0].mxu0
    %202 = vdwg.mxu0
    %v203 = vmax.f32 %v200, 0.0
    %v204 = vld [vmem:[%s5] sm:$0xff]
    %v205 = vld [vmem:[%s5 + $0x8] sm:$0xff]
    %v206 = vld [vmem:[%s5 + $0x10] sm:$0xff]
    %v207 = vld [vmem:[%s5 + $0x18] sm:$0xff]
    %v208 = vld [vmem:[%s5 + $0x20] sm:$0xff]
    %v209 = vld [vmem:[%s5 + $0x28] sm:$0xff]
    %v210 = vld [vmem:[%s5 + $0x30] sm:$0xff]
    %v211 = vld [vmem:[%s5 + $0x38] sm:$0xff]
    %v212 = vld [vmem:[%s5 + $0x40] sm:$0xff]
    %v213 = vld [vmem:[%s5 + $0x48] sm:$0xff]
    %v214 = vld [vmem:[%s5 + $0x50] sm:$0xff]
    %v215 = vld [vmem:[%s5 + $0x58] sm:$0xff]
    %v216 = vld [vmem:[%s5 + $0x60] sm:$0xff]
    %v217 = vld [vmem:[%s5 + $0x68] sm:$0xff]
    %v218 = vld [vmem:[%s5 + $0x70] sm:$0xff]
    %v219 = vld [vmem:[%s5 + $0x78] sm:$0xff]
    %v220 = vld [vmem:[%s5 + $0x80] sm:$0xff]
    %v221 = vld [vmem:[%s5 + $0x88] sm:$0xff]
    %v222 = vld [vmem:[%s5 + $0x90] sm:$0xff]
    %v223 = vld [vmem:[%s5 + $0x98] sm:$0xff]
    %v224 = vld [vmem:[%s5 + $0xa0] sm:$0xff]
    %v225 = vld [vmem:[%s5 + $0xa8] sm:$0xff]
    %v226 = vld [vmem:[%s5 + $0xb0] sm:$0xff]
    %v227 = vld [vmem:[%s5 + $0xb8] sm:$0xff]
    %v228 = vld [vmem:[%s5 + $0xc0] sm:$0xff]
    %v229 = vld [vmem:[%s5 + $0xc8] sm:$0xff]
    %v230 = vld [vmem:[%s5 + $0xd0] sm:$0xff]
    %v231 = vld [vmem:[%s5 + $0xd8] sm:$0xff]
    %v232 = vld [vmem:[%s5 + $0xe0] sm:$0xff]
    %v233 = vld [vmem:[%s5 + $0xe8] sm:$0xff]
    %v234 = vld [vmem:[%s5 + $0xf0] sm:$0xff]
    %v235 = vld [vmem:[%s5 + $0xf8] sm:$0xff]
    %v236 = vld [vmem:[%s5 + $0x100] sm:$0xff]
    %v237 = vld [vmem:[%s5 + $0x108] sm:$0xff]
    %v238 = vld [vmem:[%s5 + $0x110] sm:$0xff]
    %v239 = vld [vmem:[%s5 + $0x118] sm:$0xff]
    %v240 = vld [vmem:[%s5 + $0x120] sm:$0xff]
    %v241 = vld [vmem:[%s5 + $0x128] sm:$0xff]
    %v242 = vld [vmem:[%s5 + $0x130] sm:$0xff]
    %v243 = vld [vmem:[%s5 + $0x138] sm:$0xff]
    %v244 = vld [vmem:[%s5 + $0x140] sm:$0xff]
    %v245 = vld [vmem:[%s5 + $0x148] sm:$0xff]
    %v246 = vld [vmem:[%s5 + $0x150] sm:$0xff]
    %v247 = vld [vmem:[%s5 + $0x158] sm:$0xff]
    %v248 = vld [vmem:[%s5 + $0x160] sm:$0xff]
    %v249 = vld [vmem:[%s5 + $0x168] sm:$0xff]
    %v250 = vld [vmem:[%s5 + $0x170] sm:$0xff]
    %v251 = vld [vmem:[%s5 + $0x178] sm:$0xff]
    %v252 = vld [vmem:[%s5 + $0x180] sm:$0xff]
    %v253 = vld [vmem:[%s5 + $0x188] sm:$0xff]
    %v254 = vld [vmem:[%s5 + $0x190] sm:$0xff]
    %v255 = vld [vmem:[%s5 + $0x198] sm:$0xff]
    %v256 = vld [vmem:[%s5 + $0x1a0] sm:$0xff]
    %v257 = vld [vmem:[%s5 + $0x1a8] sm:$0xff]
    %v258 = vld [vmem:[%s5 + $0x1b0] sm:$0xff]
    %v259 = vld [vmem:[%s5 + $0x1b8] sm:$0xff]
    %v260 = vld [vmem:[%s5 + $0x1c0] sm:$0xff]
    %v261 = vld [vmem:[%s5 + $0x1c8] sm:$0xff]
    %v262 = vld [vmem:[%s5 + $0x1d0] sm:$0xff]
    %v263 = vld [vmem:[%s5 + $0x1d8] sm:$0xff]
    %v264 = vld [vmem:[%s5 + $0x1e0] sm:$0xff]
    %v265 = vld [vmem:[%s5 + $0x1e8] sm:$0xff]
    %v266 = vld [vmem:[%s5 + $0x1f0] sm:$0xff]
    %v267 = vld [vmem:[%s5 + $0x1f8] sm:$0xff]
    %v268 = vld [vmem:[%s5 + $0x200] sm:$0xff]
    %v269 = vld [vmem:[%s5 + $0x208] sm:$0xff]
    %v270 = vld [vmem:[%s5 + $0x210] sm:$0xff]
    %v271 = vld [vmem:[%s5 + $0x218] sm:$0xff]
    %v272 = vld [vmem:[%s5 + $0x220] sm:$0xff]
    %v273 = vld [vmem:[%s5 + $0x228] sm:$0xff]
    %v274 = vld [vmem:[%s5 + $0x230] sm:$0xff]
    %v275 = vld [vmem:[%s5 + $0x238] sm:$0xff]
    %v276 = vld [vmem:[%s5 + $0x240] sm:$0xff]
    %v277 = vld [vmem:[%s5 + $0x248] sm:$0xff]
    %v278 = vld [vmem:[%s5 + $0x250] sm:$0xff]
    %v279 = vld [vmem:[%s5 + $0x258] sm:$0xff]
    %v280 = vld [vmem:[%s5 + $0x260] sm:$0xff]
    %v281 = vld [vmem:[%s5 + $0x268] sm:$0xff]
    %v282 = vld [vmem:[%s5 + $0x270] sm:$0xff]
    %v283 = vld [vmem:[%s5 + $0x278] sm:$0xff]
    %v284 = vld [vmem:[%s5 + $0x280] sm:$0xff]
    %v285 = vld [vmem:[%s5 + $0x288] sm:$0xff]
    %v286 = vld [vmem:[%s5 + $0x290] sm:$0xff]
    %v287 = vld [vmem:[%s5 + $0x298] sm:$0xff]
    %v288 = vld [vmem:[%s5 + $0x2a0] sm:$0xff]
    %v289 = vld [vmem:[%s5 + $0x2a8] sm:$0xff]
    %v290 = vld [vmem:[%s5 + $0x2b0] sm:$0xff]
    %v291 = vld [vmem:[%s5 + $0x2b8] sm:$0xff]
    %v292 = vld [vmem:[%s5 + $0x2c0] sm:$0xff]
    %v293 = vld [vmem:[%s5 + $0x2c8] sm:$0xff]
    %v294 = vld [vmem:[%s5 + $0x2d0] sm:$0xff]
    %v295 = vld [vmem:[%s5 + $0x2d8] sm:$0xff]
    %v296 = vld [vmem:[%s5 + $0x2e0] sm:$0xff]
    %v297 = vld [vmem:[%s5 + $0x2e8] sm:$0xff]
    %v298 = vld [vmem:[%s5 + $0x2f0] sm:$0xff]
    %v299 = vld [vmem:[%s5 + $0x2f8] sm:$0xff]
    %v300 = vld [vmem:[%s5 + $0x300] sm:$0xff]
    %v301 = vld [vmem:[%s5 + $0x308] sm:$0xff]
    %v302 = vld [vmem:[%s5 + $0x310] sm:$0xff]
    %v303 = vld [vmem:[%s5 + $0x318] sm:$0xff]
    %v304 = vld [vmem:[%s5 + $0x320] sm:$0xff]
    %v305 = vld [vmem:[%s5 + $0x328] sm:$0xff]
    %v306 = vld [vmem:[%s5 + $0x330] sm:$0xff]
    %v307 = vld [vmem:[%s5 + $0x338] sm:$0xff]
    %v308 = vld [vmem:[%s5 + $0x340] sm:$0xff]
    %v309 = vld [vmem:[%s5 + $0x348] sm:$0xff]
    %v310 = vld [vmem:[%s5 + $0x350] sm:$0xff]
    %v311 = vld [vmem:[%s5 + $0x358] sm:$0xff]
    %v312 = vld [vmem:[%s5 + $0x360] sm:$0xff]
    %v313 = vld [vmem:[%s5 + $0x368] sm:$0xff]
    %v314 = vld [vmem:[%s5 + $0x370] sm:$0xff]
    %v315 = vld [vmem:[%s5 + $0x378] sm:$0xff]
    %v316 = vld [vmem:[%s6] sm:$0x7f]
    %v318 = vlaneseq
    %v319 = vshrl.u32 %v318, 7
    %v320 = vsub.s32 0, %v319
    %v321 = vrot.slane %v316, %v320
    %v322 = vlaneseq
    %v323 = vshrl.u32 %v322, 7
    %v324 = vsub.s32 1, %v323
    %v325 = vrot.slane %v316, %v324
    %v326 = vlaneseq
    %v327 = vshrl.u32 %v326, 7
    %v328 = vsub.s32 2, %v327
    %v329 = vrot.slane %v316, %v328
    %v330 = vlaneseq
    %v331 = vshrl.u32 %v330, 7
    %v332 = vsub.s32 3, %v331
    %v333 = vrot.slane %v316, %v332
    %v334 = vlaneseq
    %v335 = vshrl.u32 %v334, 7
    %v336 = vsub.s32 4, %v335
    %v337 = vrot.slane %v316, %v336
    %v338 = vlaneseq
    %v339 = vshrl.u32 %v338, 7
    %v340 = vsub.s32 5, %v339
    %v341 = vrot.slane %v316, %v340
    %v342 = vlaneseq
    %v343 = vshrl.u32 %v342, 7
    %v344 = vsub.s32 6, %v343
    %v345 = vrot.slane %v316, %v344
    %353 = vmatprep.subr.mxu0 %v205
    %354 = vmatpush1.msra.mxu0 %v204
    %355 = vmatprep.subr.mxu0 %v212
    %356 = vmatpush1.msra.mxu0 %v211
    %357 = vmatprep.subr.mxu0 %v219
    %358 = vmatpush1.msra.mxu0 %v218
    %359 = vmatprep.subr.mxu0 %v226
    %360 = vmatpush1.msra.mxu0 %v225
    %361 = vmatprep.subr.mxu0 %v233
    %362 = vmatpush1.msra.mxu0 %v232
    %363 = vmatprep.subr.mxu0 %v240
    %364 = vmatpush1.msra.mxu0 %v239
    %365 = vmatprep.subr.mxu0 %v247
    %366 = vmatpush1.msra.mxu0 %v246
    %367 = vmatprep.subr.mxu0 %v254
    %368 = vmatpush1.msra.mxu0 %v253
    %369 = vmatprep.subr.mxu0 %v261
    %370 = vmatpush1.msra.mxu0 %v260
    %371 = vmatprep.subr.mxu0 %v268
    %372 = vmatpush1.msra.mxu0 %v267
    %373 = vmatprep.subr.mxu0 %v275
    %374 = vmatpush1.msra.mxu0 %v274
    %375 = vmatprep.subr.mxu0 %v282
    %376 = vmatpush1.msra.mxu0 %v281
    %377 = vmatprep.subr.mxu0 %v289
    %378 = vmatpush1.msra.mxu0 %v288
    %379 = vmatprep.subr.mxu0 %v296
    %380 = vmatpush1.msra.mxu0 %v295
    %381 = vmatprep.subr.mxu0 %v303
    %382 = vmatpush1.msra.mxu0 %v302
    %383 = vmatprep.subr.mxu0 %v310
    %384 = vmatpush1.msra.mxu0 %v309
    %385 = vmatprep.subr.mxu0 0.0
    %386 = vmatpush1.msra.mxu0 0.0
    %387 = vmatprep.subr.mxu0 0.0
    %388 = vmatpush1.msra.mxu0 0.0
    %389 = vmatprep.subr.mxu0 0.0
    %390 = vmatpush1.msra.mxu0 0.0
    %391 = vmatprep.subr.mxu0 0.0
    %392 = vmatpush1.msra.mxu0 0.0
    %393 = vmatprep.subr.mxu0 0.0
    %394 = vmatpush1.msra.mxu0 0.0
    %395 = vmatprep.subr.mxu0 0.0
    %396 = vmatpush1.msra.mxu0 0.0
    %397 = vmatprep.subr.mxu0 0.0
    %398 = vmatpush1.msra.mxu0 0.0
    %399 = vmatprep.subr.mxu0 0.0
    %400 = vmatpush1.msra.mxu0 0.0
    %401 = vmatprep.subr.mxu0 0.0
    %402 = vmatpush1.msra.mxu0 0.0
    %403 = vmatprep.subr.mxu0 0.0
    %404 = vmatpush1.msra.mxu0 0.0
    %405 = vmatprep.subr.mxu0 0.0
    %406 = vmatpush1.msra.mxu0 0.0
    %407 = vmatprep.subr.mxu0 0.0
    %408 = vmatpush1.msra.mxu0 0.0
    %409 = vmatprep.subr.mxu0 0.0
    %410 = vmatpush1.msra.mxu0 0.0
    %411 = vmatprep.subr.mxu0 0.0
    %412 = vmatpush1.msra.mxu0 0.0
    %413 = vmatprep.subr.mxu0 0.0
    %414 = vmatpush1.msra.mxu0 0.0
    %415 = vmatprep.subr.mxu0 0.0
    %416 = vmatpush1.msra.mxu0 0.0
    %417 = vmatprep.mubr.f32.mxu0 0.0
    %418 = vmatmul.mubr.f32.gmra.mrb[0].mxu0 %v203
    %v419 = vpop.f32.mrb[0].mxu0
    %v420 = vadd.f32 %v321, %v419
    %v421 = vpop.f32.mrb[0].mxu0
    %v422 = vadd.f32 %v325, %v421
    %423 = vdwg.mxu0
    %424 = vmatprep.subr.mxu0 %v207
    %425 = vmatpush1.msra.mxu0 %v206
    %426 = vmatprep.subr.mxu0 %v214
    %427 = vmatpush1.msra.mxu0 %v213
    %428 = vmatprep.subr.mxu0 %v221
    %429 = vmatpush1.msra.mxu0 %v220
    %430 = vmatprep.subr.mxu0 %v228
    %431 = vmatpush1.msra.mxu0 %v227
    %432 = vmatprep.subr.mxu0 %v235
    %433 = vmatpush1.msra.mxu0 %v234
    %434 = vmatprep.subr.mxu0 %v242
    %435 = vmatpush1.msra.mxu0 %v241
    %436 = vmatprep.subr.mxu0 %v249
    %437 = vmatpush1.msra.mxu0 %v248
    %438 = vmatprep.subr.mxu0 %v256
    %439 = vmatpush1.msra.mxu0 %v255
    %440 = vmatprep.subr.mxu0 %v263
    %441 = vmatpush1.msra.mxu0 %v262
    %442 = vmatprep.subr.mxu0 %v270
    %443 = vmatpush1.msra.mxu0 %v269
    %444 = vmatprep.subr.mxu0 %v277
    %445 = vmatpush1.msra.mxu0 %v276
    %446 = vmatprep.subr.mxu0 %v284
    %447 = vmatpush1.msra.mxu0 %v283
    %448 = vmatprep.subr.mxu0 %v291
    %449 = vmatpush1.msra.mxu0 %v290
    %450 = vmatprep.subr.mxu0 %v298
    %451 = vmatpush1.msra.mxu0 %v297
    %452 = vmatprep.subr.mxu0 %v305
    %453 = vmatpush1.msra.mxu0 %v304
    %454 = vmatprep.subr.mxu0 %v312
    %455 = vmatpush1.msra.mxu0 %v311
    %456 = vmatprep.subr.mxu0 0.0
    %457 = vmatpush1.msra.mxu0 0.0
    %458 = vmatprep.subr.mxu0 0.0
    %459 = vmatpush1.msra.mxu0 0.0
    %460 = vmatprep.subr.mxu0 0.0
    %461 = vmatpush1.msra.mxu0 0.0
    %462 = vmatprep.subr.mxu0 0.0
    %463 = vmatpush1.msra.mxu0 0.0
    %464 = vmatprep.subr.mxu0 0.0
    %465 = vmatpush1.msra.mxu0 0.0
    %466 = vmatprep.subr.mxu0 0.0
    %467 = vmatpush1.msra.mxu0 0.0
    %468 = vmatprep.subr.mxu0 0.0
    %469 = vmatpush1.msra.mxu0 0.0
    %470 = vmatprep.subr.mxu0 0.0
    %471 = vmatpush1.msra.mxu0 0.0
    %472 = vmatprep.subr.mxu0 0.0
    %473 = vmatpush1.msra.mxu0 0.0
    %474 = vmatprep.subr.mxu0 0.0
    %475 = vmatpush1.msra.mxu0 0.0
    %476 = vmatprep.subr.mxu0 0.0
    %477 = vmatpush1.msra.mxu0 0.0
    %478 = vmatprep.subr.mxu0 0.0
    %479 = vmatpush1.msra.mxu0 0.0
    %480 = vmatprep.subr.mxu0 0.0
    %481 = vmatpush1.msra.mxu0 0.0
    %482 = vmatprep.subr.mxu0 0.0
    %483 = vmatpush1.msra.mxu0 0.0
    %484 = vmatprep.subr.mxu0 0.0
    %485 = vmatpush1.msra.mxu0 0.0
    %486 = vmatprep.subr.mxu0 0.0
    %487 = vmatpush1.msra.mxu0 0.0
    %488 = vmatprep.mubr.f32.mxu0 0.0
    %489 = vmatmul.mubr.f32.gmra.mrb[0].mxu0 %v203
    %v490 = vpop.f32.mrb[0].mxu0
    %v491 = vadd.f32 %v329, %v490
    %v492 = vpop.f32.mrb[0].mxu0
    %v493 = vadd.f32 %v333, %v492
    %494 = vdwg.mxu0
    %495 = vmatprep.subr.mxu0 %v209
    %496 = vmatpush1.msra.mxu0 %v208
    %497 = vmatprep.subr.mxu0 %v216
    %498 = vmatpush1.msra.mxu0 %v215
    %499 = vmatprep.subr.mxu0 %v223
    %500 = vmatpush1.msra.mxu0 %v222
    %501 = vmatprep.subr.mxu0 %v230
    %502 = vmatpush1.msra.mxu0 %v229
    %503 = vmatprep.subr.mxu0 %v237
    %504 = vmatpush1.msra.mxu0 %v236
    %505 = vmatprep.subr.mxu0 %v244
    %506 = vmatpush1.msra.mxu0 %v243
    %507 = vmatprep.subr.mxu0 %v251
    %508 = vmatpush1.msra.mxu0 %v250
    %509 = vmatprep.subr.mxu0 %v258
    %510 = vmatpush1.msra.mxu0 %v257
    %511 = vmatprep.subr.mxu0 %v265
    %512 = vmatpush1.msra.mxu0 %v264
    %513 = vmatprep.subr.mxu0 %v272
    %514 = vmatpush1.msra.mxu0 %v271
    %515 = vmatprep.subr.mxu0 %v279
    %516 = vmatpush1.msra.mxu0 %v278
    %517 = vmatprep.subr.mxu0 %v286
    %518 = vmatpush1.msra.mxu0 %v285
    %519 = vmatprep.subr.mxu0 %v293
    %520 = vmatpush1.msra.mxu0 %v292
    %521 = vmatprep.subr.mxu0 %v300
    %522 = vmatpush1.msra.mxu0 %v299
    %523 = vmatprep.subr.mxu0 %v307
    %524 = vmatpush1.msra.mxu0 %v306
    %525 = vmatprep.subr.mxu0 %v314
    %526 = vmatpush1.msra.mxu0 %v313
    %527 = vmatprep.subr.mxu0 0.0
    %528 = vmatpush1.msra.mxu0 0.0
    %529 = vmatprep.subr.mxu0 0.0
    %530 = vmatpush1.msra.mxu0 0.0
    %531 = vmatprep.subr.mxu0 0.0
    %532 = vmatpush1.msra.mxu0 0.0
    %533 = vmatprep.subr.mxu0 0.0
    %534 = vmatpush1.msra.mxu0 0.0
    %535 = vmatprep.subr.mxu0 0.0
    %536 = vmatpush1.msra.mxu0 0.0
    %537 = vmatprep.subr.mxu0 0.0
    %538 = vmatpush1.msra.mxu0 0.0
    %539 = vmatprep.subr.mxu0 0.0
    %540 = vmatpush1.msra.mxu0 0.0
    %541 = vmatprep.subr.mxu0 0.0
    %542 = vmatpush1.msra.mxu0 0.0
    %543 = vmatprep.subr.mxu0 0.0
    %544 = vmatpush1.msra.mxu0 0.0
    %545 = vmatprep.subr.mxu0 0.0
    %546 = vmatpush1.msra.mxu0 0.0
    %547 = vmatprep.subr.mxu0 0.0
    %548 = vmatpush1.msra.mxu0 0.0
    %549 = vmatprep.subr.mxu0 0.0
    %550 = vmatpush1.msra.mxu0 0.0
    %551 = vmatprep.subr.mxu0 0.0
    %552 = vmatpush1.msra.mxu0 0.0
    %553 = vmatprep.subr.mxu0 0.0
    %554 = vmatpush1.msra.mxu0 0.0
    %555 = vmatprep.subr.mxu0 0.0
    %556 = vmatpush1.msra.mxu0 0.0
    %557 = vmatprep.subr.mxu0 0.0
    %558 = vmatpush1.msra.mxu0 0.0
    %559 = vmatprep.mubr.f32.mxu0 0.0
    %560 = vmatmul.mubr.f32.gmra.mrb[0].mxu0 %v203
    %v561 = vpop.f32.mrb[0].mxu0
    %v562 = vadd.f32 %v337, %v561
    %v563 = vpop.f32.mrb[0].mxu0
    %v564 = vadd.f32 %v341, %v563
    %565 = vdwg.mxu0
    %566 = vmatprep.subr.mxu0 0.0
    %567 = vmatpush1.msra.mxu0 %v210
    %568 = vmatprep.subr.mxu0 0.0
    %569 = vmatpush1.msra.mxu0 %v217
    %570 = vmatprep.subr.mxu0 0.0
    %571 = vmatpush1.msra.mxu0 %v224
    %572 = vmatprep.subr.mxu0 0.0
    %573 = vmatpush1.msra.mxu0 %v231
    %574 = vmatprep.subr.mxu0 0.0
    %575 = vmatpush1.msra.mxu0 %v238
    %576 = vmatprep.subr.mxu0 0.0
    %577 = vmatpush1.msra.mxu0 %v245
    %578 = vmatprep.subr.mxu0 0.0
    %579 = vmatpush1.msra.mxu0 %v252
    %580 = vmatprep.subr.mxu0 0.0
    %581 = vmatpush1.msra.mxu0 %v259
    %582 = vmatprep.subr.mxu0 0.0
    %583 = vmatpush1.msra.mxu0 %v266
    %584 = vmatprep.subr.mxu0 0.0
    %585 = vmatpush1.msra.mxu0 %v273
    %586 = vmatprep.subr.mxu0 0.0
    %587 = vmatpush1.msra.mxu0 %v280
    %588 = vmatprep.subr.mxu0 0.0
    %589 = vmatpush1.msra.mxu0 %v287
    %590 = vmatprep.subr.mxu0 0.0
    %591 = vmatpush1.msra.mxu0 %v294
    %592 = vmatprep.subr.mxu0 0.0
    %593 = vmatpush1.msra.mxu0 %v301
    %594 = vmatprep.subr.mxu0 0.0
    %595 = vmatpush1.msra.mxu0 %v308
    %596 = vmatprep.subr.mxu0 0.0
    %597 = vmatpush1.msra.mxu0 %v315
    %598 = vmatprep.subr.mxu0 0.0
    %599 = vmatpush1.msra.mxu0 0.0
    %600 = vmatprep.subr.mxu0 0.0
    %601 = vmatpush1.msra.mxu0 0.0
    %602 = vmatprep.subr.mxu0 0.0
    %603 = vmatpush1.msra.mxu0 0.0
    %604 = vmatprep.subr.mxu0 0.0
    %605 = vmatpush1.msra.mxu0 0.0
    %606 = vmatprep.subr.mxu0 0.0
    %607 = vmatpush1.msra.mxu0 0.0
    %608 = vmatprep.subr.mxu0 0.0
    %609 = vmatpush1.msra.mxu0 0.0
    %610 = vmatprep.subr.mxu0 0.0
    %611 = vmatpush1.msra.mxu0 0.0
    %612 = vmatprep.subr.mxu0 0.0
    %613 = vmatpush1.msra.mxu0 0.0
    %614 = vmatprep.subr.mxu0 0.0
    %615 = vmatpush1.msra.mxu0 0.0
    %616 = vmatprep.subr.mxu0 0.0
    %617 = vmatpush1.msra.mxu0 0.0
    %618 = vmatprep.subr.mxu0 0.0
    %619 = vmatpush1.msra.mxu0 0.0
    %620 = vmatprep.subr.mxu0 0.0
    %621 = vmatpush1.msra.mxu0 0.0
    %622 = vmatprep.subr.mxu0 0.0
    %623 = vmatpush1.msra.mxu0 0.0
    %624 = vmatprep.subr.mxu0 0.0
    %625 = vmatpush1.msra.mxu0 0.0
    %626 = vmatprep.subr.mxu0 0.0
    %627 = vmatpush1.msra.mxu0 0.0
    %628 = vmatprep.subr.mxu0 0.0
    %629 = vmatpush1.msra.mxu0 0.0
    %630 = vmatprep.mubr.f32.mxu0 0.0
    %631 = vmatmul.mubr.f32.gmra.mrb[0].mxu0 %v203
    %v632 = vpop.f32.mrb[0].mxu0
    %v633 = vadd.f32 %v345, %v632
    %v634 = vpop.f32.mrb[0].mxu0
    %635 = vdwg.mxu0
    %v636 = vtanh.pop %v420
    %v637 = vtanh.pop %v422
    %v638 = vtanh.pop %v491
    %v639 = vtanh.pop %v493
    %v640 = vtanh.pop %v562
    %v641 = vtanh.pop %v564
    %v642 = vtanh.pop %v633
    %643 = vst [vmem:[#allocation2] sm:$0xff] %v636
    %644 = vst [vmem:[#allocation2 + $0x8] sm:$0xff] %v637
    %645 = vst [vmem:[#allocation2 + $0x10] sm:$0xff] %v638
    %646 = vst [vmem:[#allocation2 + $0x18] sm:$0xff] %v639
    %647 = vst [vmem:[#allocation2 + $0x20] sm:$0xff] %v640
    %648 = vst [vmem:[#allocation2 + $0x28] sm:$0xff] %v641
    %vm649 = vcmask 130048
    %650 = vst.msk [vmem:[#allocation2 + $0x30] sm:$0xff] %vm649, %v642
    // Predicated region
    $region30: #{tpu_custom_call.1} parent=1 // pred_check
      _
    $region31: #{tpu_custom_call.1} parent=1 // pred_check_branch
      %652 = sbr.rel (0) target = $region33
    $region32: #{tpu_custom_call.1} parent=1 // pred_region
      %s654 = ssub.s32 896, 896
      %655 = vsyncadd [#allocation3], %s654
      %s657 = sshll.u32 [#allocation2], 4
      %s658 = int_to_ptr.vmem [resolvable:$true] %s657
      %660 = dma.vmem_to_hbm [thread:$0]  %s658, 896, %s7, [#allocation3]
    $region33: #{tpu_custom_call.1} parent=1 // pred_fallthru
      _
    // Predicated region
    $region34: #{tpu_custom_call.1} parent=1 // pred_check
      _
    $region35: #{tpu_custom_call.1} parent=1 // pred_check_branch
      %662 = sbr.rel (0) target = $region37
    $region36: #{tpu_custom_call.1} parent=1 // pred_region
      %663 = dma.done [#allocation3], 896
    $region37: #{tpu_custom_call.1} parent=1 // pred_fallthru
      _
    %664 = vsyncpa [#allocation3], 1

</llo_original>
